<compile_context>
chip_gen: v5e
topology: v5e:2x2
jax: 0.10.0
libtpu: 0.0.40
codegen_flags: <defaults>
</compile_context>

<pallas_src>
import functools
from collections import namedtuple

import jax
import jax.numpy as jnp
from jax.experimental import pallas as pl
from jax.experimental.pallas import tpu as pltpu

SphericalPointCloud = namedtuple("SphericalPointCloud", ["xyz", "feats", "anchors"])


def _round_up(x, m):
    return ((x + m - 1) // m) * m


def _vmem_capacity_bytes():
    # Generation-aware VMEM size (64 MiB on v7x, 128 MiB on v5e/v6e).  Falls back
    # to the v7x number, which is safe everywhere.
    try:
        return int(pltpu.get_tpu_info().vmem_capacity_bytes)
    except Exception:
        return 64 * 1024 * 1024


def _choose_point_tile(n_p, n_a, dim_in, dim_out, dim_out_p, bs, ct_bytes, ot_bytes, ks):
    """Pick the points-per-step tile TP (lane axis) and a matching VMEM limit."""
    cap = _vmem_capacity_bytes()
    budget = int(0.65 * cap)  # headroom for live values (acc, bias bcast) + scratch

    # W3 + bias; constant index maps -> fetched once, budgeted double-buffered.
    resident = 2 * (ks * dim_out_p * dim_in * ct_bytes + dim_out_p * 4)

    def need(tp):
        x_blk = n_a * dim_in * tp * ct_bytes
        o_blk = n_a * dim_out * tp * ot_bytes
        return resident + 2 * (x_blk + o_blk)  # double-buffered in/out tiles

    if n_p % 128 == 0:
        tp = n_p
        while tp > 128 and need(tp) > budget:
            tp -= 128
    else:
        tp = n_p  # BlockSpec needs a multiple of 128 OR the full dim

    # v7x has 2 TensorCores per chip: keep the (all-parallel) grid at >= 2 steps.
    if bs * pl.cdiv(n_p, tp) < 2 and n_p % 128 == 0 and n_p >= 256:
        tp = _round_up(n_p // 2, 128)

    # Auto-raise the scoped-VMEM limit to what the chosen tiles actually need.
    limit = max(32 * 1024 * 1024, need(tp) + (4 << 20))
    limit = min(limit, int(0.9 * cap))
    return tp, limit


# ---------------------------------------------------------------------------
# Fused kernel: per (batch, point-tile) step, for every output anchor a:
#   out[:, p_tile, a] = sum_j W3[j] @ feats[:, p_tile, idx[a, j]] + bias
# ---------------------------------------------------------------------------
def _intra_so3_kernel(w_ref, b_ref, x_ref, o_ref, *, idx):
    # w_ref: (ks, dim_out_p, dim_in)   compute dtype   -- resident (constant index map)
    # b_ref: (dim_out_p, 1)            f32             -- resident
    # x_ref: (1, na, dim_in, TP)       compute dtype   -- un-replicated feats tile
    # o_ref: (1, na, dim_out, TP)      out dtype
    tp = x_ref.shape[-1]
    dim_out = o_ref.shape[2]
    ks = w_ref.shape[0]

    # Hoisted once per grid step (JAX does not CSE broadcast_in_dim).
    bias_full = jnp.broadcast_to(b_ref[...], (b_ref.shape[0], tp))  # (dim_out_p, TP) f32
    ws = [w_ref[j] for j in range(ks)]                              # (dim_out_p, dim_in)

    for a, nbrs in enumerate(idx):  # static unroll over output anchors
        acc = bias_full + jnp.dot(ws[0], x_ref[0, nbrs[0]],
                                  preferred_element_type=jnp.float32)
        for j in range(1, ks):      # per-j MXU accumulation (fused anchor gather)
            acc = acc + jnp.dot(ws[j], x_ref[0, nbrs[j]],
                                preferred_element_type=jnp.float32)
        # Slice off any W-padding rows in-register; no post-kernel HBM slice.
        o_ref[0, a] = acc[:dim_out].astype(o_ref.dtype)


def intra_so3_conv_feats(feats, intra_idx, W, bias, *,
                         compute_dtype=jnp.bfloat16, out_dtype=None):
    """Fused IntraSO3Conv forward on the feature tensor.

    feats: (bs, dim_in, np, na);  W: (dim_out, dim_in*ks);  bias: (dim_out,1)-like;
    intra_idx: (na, ks) concrete int table (module buffer; baked statically).
    compute_dtype: MXU operand dtype.  bf16 (default, f32 accumulate) halves the
      HBM read traffic of feats; pass jnp.float32 for exact parity with PyTorch.
    out_dtype: output dtype (default feats.dtype); bf16 halves write traffic.
    """
    bs, dim_in, n_p, n_a = feats.shape
    dim_out, K = W.shape
    na2, ks = intra_idx.shape
    assert na2 == n_a and K == dim_in * ks
    out_dtype = feats.dtype if out_dtype is None else out_dtype

    # Static neighbor table (intra_idx is a fixed module buffer).
    idx_host = jax.device_get(intra_idx)
    idx_static = tuple(tuple(int(v) for v in row) for row in idx_host)

    # Anchor-major input; the compute-dtype cast fuses into this single pass.
    feats_t = jnp.transpose(feats, (0, 3, 1, 2)).astype(compute_dtype)  # (bs, na, dim_in, np)

    # W[o, c*ks + j] -> W3[j, o, c]; pad dim_out rows to a sublane multiple (8).
    dim_out_p = _round_up(dim_out, 8)
    W3 = jnp.transpose(W.reshape(dim_out, dim_in, ks), (2, 0, 1)).astype(compute_dtype)
    b2 = jnp.reshape(bias, (dim_out, 1)).astype(jnp.float32)
    if dim_out_p != dim_out:
        W3 = jnp.pad(W3, ((0, 0), (0, dim_out_p - dim_out), (0, 0)))
        b2 = jnp.pad(b2, ((0, dim_out_p - dim_out), (0, 0)))

    ct_bytes = jnp.dtype(compute_dtype).itemsize
    ot_bytes = jnp.dtype(out_dtype).itemsize
    tp, vmem_limit = _choose_point_tile(n_p, n_a, dim_in, dim_out, dim_out_p, bs,
                                        ct_bytes, ot_bytes, ks)
    grid = (bs, pl.cdiv(n_p, tp))

    bytes_accessed = int(
        bs * n_a * dim_in * n_p * ct_bytes        # feats tile reads (read once)
        + bs * n_a * dim_out * n_p * ot_bytes     # output writes
        + W3.size * ct_bytes + b2.size * 4
    )

    out_t = pl.pallas_call(
        functools.partial(_intra_so3_kernel, idx=idx_static),
        out_shape=jax.ShapeDtypeStruct((bs, n_a, dim_out, n_p), out_dtype),
        grid_spec=pltpu.PrefetchScalarGridSpec(
            num_scalar_prefetch=0,
            grid=grid,
            in_specs=[
                pl.BlockSpec((ks, dim_out_p, dim_in), lambda b, p: (0, 0, 0)),  # W3 (resident)
                pl.BlockSpec((dim_out_p, 1), lambda b, p: (0, 0)),              # bias (resident)
                pl.BlockSpec((1, n_a, dim_in, tp), lambda b, p: (b, 0, 0, p)),  # feats tile
            ],
            out_specs=pl.BlockSpec((1, n_a, dim_out, tp), lambda b, p: (b, 0, 0, p)),
        ),
        compiler_params=pltpu.CompilerParams(
            dimension_semantics=("parallel", "parallel"),
            vmem_limit_bytes=int(vmem_limit),
        ),
        cost_estimate=pl.CostEstimate(
            flops=int(2 * bs * n_a * ks * dim_out * dim_in * n_p),
            transcendentals=0,
            bytes_accessed=bytes_accessed,
        ),
    )(W3, b2, feats_t)

    # Back to the module's layout.  One pass over the output (much smaller than
    # the ks-times-replicated `grouped` tensor the old path materialized).
    return jnp.transpose(out_t, (0, 2, 3, 1))  # (bs, dim_out, np, na)


# ---------------------------------------------------------------------------
# IntraSO3Conv wrapper
# ---------------------------------------------------------------------------
def intra_so3_conv(x, intra_idx, anchors, W, bias, **kwargs):
    feats = intra_so3_conv_feats(x.feats, intra_idx, W, bias, **kwargs)
    return SphericalPointCloud(x.xyz, feats, anchors)


def intra_so3conv_grouping(intra_idx, feats):
    """Pure-JAX mirror of vgtk's grouping — used only as the test reference here
    (the Pallas path fuses this gather and never materializes the result)."""
    nb, c, n_p, n_a = feats.shape
    ks = intra_idx.shape[1]
    g = jnp.take(feats, intra_idx.reshape(-1), axis=3)   # (bs, c, np, na*ks)
    g = g.reshape(nb, c, n_p, n_a, ks)
    return jnp.transpose(g, (0, 1, 4, 2, 3))             # (bs, c, ks, np, na)


def init_params(key, dim_in, dim_out, kernel_size):
    """Deterministic xavier_normal_ (gain = calculate_gain('relu') = sqrt(2))."""
    fan_in = dim_in * kernel_size
    fan_out = dim_out * kernel_size
    std = jnp.sqrt(2.0) * jnp.sqrt(2.0 / (fan_in + fan_out))
    W = std * jax.random.normal(key, (dim_out, dim_in, kernel_size), dtype=jnp.float32)
    W = W.reshape(dim_out, dim_in * kernel_size)
    bias = jnp.full((dim_out, 1), 0.001, dtype=jnp.float32)  # torch (1,dim_out,1) post-broadcast
    return W, bias


if __name__ == "__main__":
    key = jax.random.PRNGKey(0)
    k_w, k_x, k_p = jax.random.split(key, 3)

    bs, dim_in, dim_out = 2, 4, 8
    n_p, n_a, ks = 16, 8, 3

    # Deterministic stand-ins for vgtk's 60-anchor tables.
    intra_idx = ((jnp.arange(n_a)[:, None] + jnp.arange(ks)[None, :]) % n_a).astype(jnp.int32)
    anchors = jnp.tile(jnp.eye(3, dtype=jnp.float32)[None], (n_a, 1, 1))

    W, bias = init_params(k_w, dim_in, dim_out, ks)
    feats = jax.random.normal(k_x, (bs, dim_in, n_p, n_a), dtype=jnp.float32)
    xyz = jax.random.normal(k_p, (bs, n_p, 3), dtype=jnp.float32)
    x = SphericalPointCloud(xyz, feats, anchors)

    # Default (bf16 MXU operands, f32 accumulate)
    out = intra_so3_conv(x, intra_idx, anchors, W, bias)
    out_feats = jax.block_until_ready(out.feats)

    # Reference: plain-JAX mirror of the PyTorch forward (f32 throughout).
    grouped = intra_so3conv_grouping(intra_idx, feats)
    x2 = grouped.reshape(bs, dim_in * ks, n_p * n_a)
    ref = (jnp.einsum("ok,bkn->bon", W, x2) + bias.reshape(1, dim_out, 1)).reshape(
        bs, dim_out, n_p, n_a)

    assert out_feats.shape == (bs, dim_out, n_p, n_a)
    err_bf16 = float(jnp.max(jnp.abs(out_feats - ref)))
    assert jnp.allclose(out_feats, ref, atol=3e-2, rtol=3e-2), err_bf16

    # f32 compute knob: exact parity with the PyTorch f32 path.
    out32 = intra_so3_conv(x, intra_idx, anchors, W, bias, compute_dtype=jnp.float32)
    out32_feats = jax.block_until_ready(out32.feats)
    err_f32 = float(jnp.max(jnp.abs(out32_feats - ref)))
    assert jnp.allclose(out32_feats, ref, atol=1e-5, rtol=1e-5), err_f32

    print("KERNEL_OK")
</pallas_src>

<mosaic_0001>
module attributes {stable_mosaic.version = 11 : i64} {
  func.func @_intra_so3_kernel(%arg0: i32, %arg1: i32, %arg2: memref<3x8x4xbf16, #tpu.memory_space<vmem>>, %arg3: memref<8x1xf32, #tpu.memory_space<vmem>>, %arg4: memref<1x8x4x16xbf16, #tpu.memory_space<vmem>>, %arg5: memref<1x8x8x16xf32, #tpu.memory_space<vmem>>) attributes {dimension_semantics = [#tpu.dimension_semantics<parallel>, #tpu.dimension_semantics<parallel>], iteration_bounds = array<i64: 2, 1>, scalar_prefetch = 0 : i64, scratch_operands = 0 : i64, tpu.core_type = #tpu.core_type<tc>, window_params = [{pipeline_mode = #tpu.pipeline_mode<synchronous>, transform_indices = @transform_0, window_bounds = array<i64: 3, 8, 4>}, {pipeline_mode = #tpu.pipeline_mode<synchronous>, transform_indices = @transform_1, window_bounds = array<i64: 8, 1>}, {transform_indices = @transform_2, window_bounds = array<i64: 1, 8, 4, 16>}, {transform_indices = @transform_3, window_bounds = array<i64: 1, 8, 8, 16>}]} {
    %c0 = arith.constant 0 : index
    %c0_0 = arith.constant 0 : index
    %0 = vector.load %arg3[%c0, %c0_0] : memref<8x1xf32, #tpu.memory_space<vmem>>, vector<8x1xf32>
    %1 = vector.shape_cast %0 : vector<8x1xf32> to vector<8x1xf32>
    %2 = vector.broadcast %1 : vector<8x1xf32> to vector<8x16xf32>
    %c0_1 = arith.constant 0 : index
    %c0_2 = arith.constant 0 : index
    %c0_3 = arith.constant 0 : index
    %3 = vector.load %arg2[%c0_1, %c0_2, %c0_3] : memref<3x8x4xbf16, #tpu.memory_space<vmem>>, vector<1x8x4xbf16>
    %4 = vector.shape_cast %3 : vector<1x8x4xbf16> to vector<8x4xbf16>
    %c1 = arith.constant 1 : index
    %c0_4 = arith.constant 0 : index
    %c0_5 = arith.constant 0 : index
    %5 = vector.load %arg2[%c1, %c0_4, %c0_5] : memref<3x8x4xbf16, #tpu.memory_space<vmem>>, vector<1x8x4xbf16>
    %6 = vector.shape_cast %5 : vector<1x8x4xbf16> to vector<8x4xbf16>
    %c2 = arith.constant 2 : index
    %c0_6 = arith.constant 0 : index
    %c0_7 = arith.constant 0 : index
    %7 = vector.load %arg2[%c2, %c0_6, %c0_7] : memref<3x8x4xbf16, #tpu.memory_space<vmem>>, vector<1x8x4xbf16>
    %8 = vector.shape_cast %7 : vector<1x8x4xbf16> to vector<8x4xbf16>
    %c0_8 = arith.constant 0 : index
    %c0_9 = arith.constant 0 : index
    %c0_10 = arith.constant 0 : index
    %c0_11 = arith.constant 0 : index
    %9 = vector.load %arg4[%c0_8, %c0_9, %c0_10, %c0_11] : memref<1x8x4x16xbf16, #tpu.memory_space<vmem>>, vector<1x1x4x16xbf16>
    %10 = vector.shape_cast %9 : vector<1x1x4x16xbf16> to vector<4x16xbf16>
    %cst = arith.constant dense<0.000000e+00> : vector<8x16xf32>
    %11 = tpu.matmul %4, %10, %cst {dimension_numbers = #tpu.dot_dimension_numbers<[1], [0], [0], [1], [0, 0, 1, 1], [], []>} : vector<8x4xbf16>, vector<4x16xbf16>, vector<8x16xf32> -> vector<8x16xf32>
    %12 = arith.addf %2, %11 : vector<8x16xf32>
    %c0_12 = arith.constant 0 : index
    %c1_13 = arith.constant 1 : index
    %c0_14 = arith.constant 0 : index
    %c0_15 = arith.constant 0 : index
    %13 = vector.load %arg4[%c0_12, %c1_13, %c0_14, %c0_15] : memref<1x8x4x16xbf16, #tpu.memory_space<vmem>>, vector<1x1x4x16xbf16>
    %14 = vector.shape_cast %13 : vector<1x1x4x16xbf16> to vector<4x16xbf16>
    %cst_16 = arith.constant dense<0.000000e+00> : vector<8x16xf32>
    %15 = tpu.matmul %6, %14, %cst_16 {dimension_numbers = #tpu.dot_dimension_numbers<[1], [0], [0], [1], [0, 0, 1, 1], [], []>} : vector<8x4xbf16>, vector<4x16xbf16>, vector<8x16xf32> -> vector<8x16xf32>
    %16 = arith.addf %12, %15 : vector<8x16xf32>
    %c0_17 = arith.constant 0 : index
    %c2_18 = arith.constant 2 : index
    %c0_19 = arith.constant 0 : index
    %c0_20 = arith.constant 0 : index
    %17 = vector.load %arg4[%c0_17, %c2_18, %c0_19, %c0_20] : memref<1x8x4x16xbf16, #tpu.memory_space<vmem>>, vector<1x1x4x16xbf16>
    %18 = vector.shape_cast %17 : vector<1x1x4x16xbf16> to vector<4x16xbf16>
    %cst_21 = arith.constant dense<0.000000e+00> : vector<8x16xf32>
    %19 = tpu.matmul %8, %18, %cst_21 {dimension_numbers = #tpu.dot_dimension_numbers<[1], [0], [0], [1], [0, 0, 1, 1], [], []>} : vector<8x4xbf16>, vector<4x16xbf16>, vector<8x16xf32> -> vector<8x16xf32>
    %20 = arith.addf %16, %19 : vector<8x16xf32>
    %c0_22 = arith.constant 0 : index
    %c0_23 = arith.constant 0 : index
    %c0_24 = arith.constant 0 : index
    %c0_25 = arith.constant 0 : index
    %21 = vector.load %arg5[%c0_22, %c0_23, %c0_24, %c0_25] : memref<1x8x8x16xf32, #tpu.memory_space<vmem>>, vector<1x1x8x16xf32>
    %22 = vector.shape_cast %21 : vector<1x1x8x16xf32> to vector<8x16xf32>
    %23 = vector.shape_cast %20 : vector<8x16xf32> to vector<1x1x8x16xf32>
    tpu.vector_store %arg5[%c0_22, %c0_23, %c0_24, %c0_25], %23 {strides = array<i32>} : memref<1x8x8x16xf32, #tpu.memory_space<vmem>>, vector<1x1x8x16xf32>,
    %c0_26 = arith.constant 0 : index
    %c1_27 = arith.constant 1 : index
    %c0_28 = arith.constant 0 : index
    %c0_29 = arith.constant 0 : index
    %24 = vector.load %arg4[%c0_26, %c1_27, %c0_28, %c0_29] : memref<1x8x4x16xbf16, #tpu.memory_space<vmem>>, vector<1x1x4x16xbf16>
    %25 = vector.shape_cast %24 : vector<1x1x4x16xbf16> to vector<4x16xbf16>
    %cst_30 = arith.constant dense<0.000000e+00> : vector<8x16xf32>
    %26 = tpu.matmul %4, %25, %cst_30 {dimension_numbers = #tpu.dot_dimension_numbers<[1], [0], [0], [1], [0, 0, 1, 1], [], []>} : vector<8x4xbf16>, vector<4x16xbf16>, vector<8x16xf32> -> vector<8x16xf32>
    %27 = arith.addf %2, %26 : vector<8x16xf32>
    %c0_31 = arith.constant 0 : index
    %c2_32 = arith.constant 2 : index
    %c0_33 = arith.constant 0 : index
    %c0_34 = arith.constant 0 : index
    %28 = vector.load %arg4[%c0_31, %c2_32, %c0_33, %c0_34] : memref<1x8x4x16xbf16, #tpu.memory_space<vmem>>, vector<1x1x4x16xbf16>
    %29 = vector.shape_cast %28 : vector<1x1x4x16xbf16> to vector<4x16xbf16>
    %cst_35 = arith.constant dense<0.000000e+00> : vector<8x16xf32>
    %30 = tpu.matmul %6, %29, %cst_35 {dimension_numbers = #tpu.dot_dimension_numbers<[1], [0], [0], [1], [0, 0, 1, 1], [], []>} : vector<8x4xbf16>, vector<4x16xbf16>, vector<8x16xf32> -> vector<8x16xf32>
    %31 = arith.addf %27, %30 : vector<8x16xf32>
    %c0_36 = arith.constant 0 : index
    %c3 = arith.constant 3 : index
    %c0_37 = arith.constant 0 : index
    %c0_38 = arith.constant 0 : index
    %32 = vector.load %arg4[%c0_36, %c3, %c0_37, %c0_38] : memref<1x8x4x16xbf16, #tpu.memory_space<vmem>>, vector<1x1x4x16xbf16>
    %33 = vector.shape_cast %32 : vector<1x1x4x16xbf16> to vector<4x16xbf16>
    %cst_39 = arith.constant dense<0.000000e+00> : vector<8x16xf32>
    %34 = tpu.matmul %8, %33, %cst_39 {dimension_numbers = #tpu.dot_dimension_numbers<[1], [0], [0], [1], [0, 0, 1, 1], [], []>} : vector<8x4xbf16>, vector<4x16xbf16>, vector<8x16xf32> -> vector<8x16xf32>
    %35 = arith.addf %31, %34 : vector<8x16xf32>
    %c0_40 = arith.constant 0 : index
    %c1_41 = arith.constant 1 : index
    %c0_42 = arith.constant 0 : index
    %c0_43 = arith.constant 0 : index
    %36 = vector.load %arg5[%c0_40, %c1_41, %c0_42, %c0_43] : memref<1x8x8x16xf32, #tpu.memory_space<vmem>>, vector<1x1x8x16xf32>
    %37 = vector.shape_cast %36 : vector<1x1x8x16xf32> to vector<8x16xf32>
    %38 = vector.shape_cast %35 : vector<8x16xf32> to vector<1x1x8x16xf32>
    tpu.vector_store %arg5[%c0_40, %c1_41, %c0_42, %c0_43], %38 {strides = array<i32>} : memref<1x8x8x16xf32, #tpu.memory_space<vmem>>, vector<1x1x8x16xf32>,
    %c0_44 = arith.constant 0 : index
    %c2_45 = arith.constant 2 : index
    %c0_46 = arith.constant 0 : index
    %c0_47 = arith.constant 0 : index
    %39 = vector.load %arg4[%c0_44, %c2_45, %c0_46, %c0_47] : memref<1x8x4x16xbf16, #tpu.memory_space<vmem>>, vector<1x1x4x16xbf16>
    %40 = vector.shape_cast %39 : vector<1x1x4x16xbf16> to vector<4x16xbf16>
    %cst_48 = arith.constant dense<0.000000e+00> : vector<8x16xf32>
    %41 = tpu.matmul %4, %40, %cst_48 {dimension_numbers = #tpu.dot_dimension_numbers<[1], [0], [0], [1], [0, 0, 1, 1], [], []>} : vector<8x4xbf16>, vector<4x16xbf16>, vector<8x16xf32> -> vector<8x16xf32>
    %42 = arith.addf %2, %41 : vector<8x16xf32>
    %c0_49 = arith.constant 0 : index
    %c3_50 = arith.constant 3 : index
    %c0_51 = arith.constant 0 : index
    %c0_52 = arith.constant 0 : index
    %43 = vector.load %arg4[%c0_49, %c3_50, %c0_51, %c0_52] : memref<1x8x4x16xbf16, #tpu.memory_space<vmem>>, vector<1x1x4x16xbf16>
    %44 = vector.shape_cast %43 : vector<1x1x4x16xbf16> to vector<4x16xbf16>
    %cst_53 = arith.constant dense<0.000000e+00> : vector<8x16xf32>
    %45 = tpu.matmul %6, %44, %cst_53 {dimension_numbers = #tpu.dot_dimension_numbers<[1], [0], [0], [1], [0, 0, 1, 1], [], []>} : vector<8x4xbf16>, vector<4x16xbf16>, vector<8x16xf32> -> vector<8x16xf32>
    %46 = arith.addf %42, %45 : vector<8x16xf32>
    %c0_54 = arith.constant 0 : index
    %c4 = arith.constant 4 : index
    %c0_55 = arith.constant 0 : index
    %c0_56 = arith.constant 0 : index
    %47 = vector.load %arg4[%c0_54, %c4, %c0_55, %c0_56] : memref<1x8x4x16xbf16, #tpu.memory_space<vmem>>, vector<1x1x4x16xbf16>
    %48 = vector.shape_cast %47 : vector<1x1x4x16xbf16> to vector<4x16xbf16>
    %cst_57 = arith.constant dense<0.000000e+00> : vector<8x16xf32>
    %49 = tpu.matmul %8, %48, %cst_57 {dimension_numbers = #tpu.dot_dimension_numbers<[1], [0], [0], [1], [0, 0, 1, 1], [], []>} : vector<8x4xbf16>, vector<4x16xbf16>, vector<8x16xf32> -> vector<8x16xf32>
    %50 = arith.addf %46, %49 : vector<8x16xf32>
    %c0_58 = arith.constant 0 : index
    %c2_59 = arith.constant 2 : index
    %c0_60 = arith.constant 0 : index
    %c0_61 = arith.constant 0 : index
    %51 = vector.load %arg5[%c0_58, %c2_59, %c0_60, %c0_61] : memref<1x8x8x16xf32, #tpu.memory_space<vmem>>, vector<1x1x8x16xf32>
    %52 = vector.shape_cast %51 : vector<1x1x8x16xf32> to vector<8x16xf32>
    %53 = vector.shape_cast %50 : vector<8x16xf32> to vector<1x1x8x16xf32>
    tpu.vector_store %arg5[%c0_58, %c2_59, %c0_60, %c0_61], %53 {strides = array<i32>} : memref<1x8x8x16xf32, #tpu.memory_space<vmem>>, vector<1x1x8x16xf32>,
    %c0_62 = arith.constant 0 : index
    %c3_63 = arith.constant 3 : index
    %c0_64 = arith.constant 0 : index
    %c0_65 = arith.constant 0 : index
    %54 = vector.load %arg4[%c0_62, %c3_63, %c0_64, %c0_65] : memref<1x8x4x16xbf16, #tpu.memory_space<vmem>>, vector<1x1x4x16xbf16>
    %55 = vector.shape_cast %54 : vector<1x1x4x16xbf16> to vector<4x16xbf16>
    %cst_66 = arith.constant dense<0.000000e+00> : vector<8x16xf32>
    %56 = tpu.matmul %4, %55, %cst_66 {dimension_numbers = #tpu.dot_dimension_numbers<[1], [0], [0], [1], [0, 0, 1, 1], [], []>} : vector<8x4xbf16>, vector<4x16xbf16>, vector<8x16xf32> -> vector<8x16xf32>
    %57 = arith.addf %2, %56 : vector<8x16xf32>
    %c0_67 = arith.constant 0 : index
    %c4_68 = arith.constant 4 : index
    %c0_69 = arith.constant 0 : index
    %c0_70 = arith.constant 0 : index
    %58 = vector.load %arg4[%c0_67, %c4_68, %c0_69, %c0_70] : memref<1x8x4x16xbf16, #tpu.memory_space<vmem>>, vector<1x1x4x16xbf16>
    %59 = vector.shape_cast %58 : vector<1x1x4x16xbf16> to vector<4x16xbf16>
    %cst_71 = arith.constant dense<0.000000e+00> : vector<8x16xf32>
    %60 = tpu.matmul %6, %59, %cst_71 {dimension_numbers = #tpu.dot_dimension_numbers<[1], [0], [0], [1], [0, 0, 1, 1], [], []>} : vector<8x4xbf16>, vector<4x16xbf16>, vector<8x16xf32> -> vector<8x16xf32>
    %61 = arith.addf %57, %60 : vector<8x16xf32>
    %c0_72 = arith.constant 0 : index
    %c5 = arith.constant 5 : index
    %c0_73 = arith.constant 0 : index
    %c0_74 = arith.constant 0 : index
    %62 = vector.load %arg4[%c0_72, %c5, %c0_73, %c0_74] : memref<1x8x4x16xbf16, #tpu.memory_space<vmem>>, vector<1x1x4x16xbf16>
    %63 = vector.shape_cast %62 : vector<1x1x4x16xbf16> to vector<4x16xbf16>
    %cst_75 = arith.constant dense<0.000000e+00> : vector<8x16xf32>
    %64 = tpu.matmul %8, %63, %cst_75 {dimension_numbers = #tpu.dot_dimension_numbers<[1], [0], [0], [1], [0, 0, 1, 1], [], []>} : vector<8x4xbf16>, vector<4x16xbf16>, vector<8x16xf32> -> vector<8x16xf32>
    %65 = arith.addf %61, %64 : vector<8x16xf32>
    %c0_76 = arith.constant 0 : index
    %c3_77 = arith.constant 3 : index
    %c0_78 = arith.constant 0 : index
    %c0_79 = arith.constant 0 : index
    %66 = vector.load %arg5[%c0_76, %c3_77, %c0_78, %c0_79] : memref<1x8x8x16xf32, #tpu.memory_space<vmem>>, vector<1x1x8x16xf32>
    %67 = vector.shape_cast %66 : vector<1x1x8x16xf32> to vector<8x16xf32>
    %68 = vector.shape_cast %65 : vector<8x16xf32> to vector<1x1x8x16xf32>
    tpu.vector_store %arg5[%c0_76, %c3_77, %c0_78, %c0_79], %68 {strides = array<i32>} : memref<1x8x8x16xf32, #tpu.memory_space<vmem>>, vector<1x1x8x16xf32>,
    %c0_80 = arith.constant 0 : index
    %c4_81 = arith.constant 4 : index
    %c0_82 = arith.constant 0 : index
    %c0_83 = arith.constant 0 : index
    %69 = vector.load %arg4[%c0_80, %c4_81, %c0_82, %c0_83] : memref<1x8x4x16xbf16, #tpu.memory_space<vmem>>, vector<1x1x4x16xbf16>
    %70 = vector.shape_cast %69 : vector<1x1x4x16xbf16> to vector<4x16xbf16>
    %cst_84 = arith.constant dense<0.000000e+00> : vector<8x16xf32>
    %71 = tpu.matmul %4, %70, %cst_84 {dimension_numbers = #tpu.dot_dimension_numbers<[1], [0], [0], [1], [0, 0, 1, 1], [], []>} : vector<8x4xbf16>, vector<4x16xbf16>, vector<8x16xf32> -> vector<8x16xf32>
    %72 = arith.addf %2, %71 : vector<8x16xf32>
    %c0_85 = arith.constant 0 : index
    %c5_86 = arith.constant 5 : index
    %c0_87 = arith.constant 0 : index
    %c0_88 = arith.constant 0 : index
    %73 = vector.load %arg4[%c0_85, %c5_86, %c0_87, %c0_88] : memref<1x8x4x16xbf16, #tpu.memory_space<vmem>>, vector<1x1x4x16xbf16>
    %74 = vector.shape_cast %73 : vector<1x1x4x16xbf16> to vector<4x16xbf16>
    %cst_89 = arith.constant dense<0.000000e+00> : vector<8x16xf32>
    %75 = tpu.matmul %6, %74, %cst_89 {dimension_numbers = #tpu.dot_dimension_numbers<[1], [0], [0], [1], [0, 0, 1, 1], [], []>} : vector<8x4xbf16>, vector<4x16xbf16>, vector<8x16xf32> -> vector<8x16xf32>
    %76 = arith.addf %72, %75 : vector<8x16xf32>
    %c0_90 = arith.constant 0 : index
    %c6 = arith.constant 6 : index
    %c0_91 = arith.constant 0 : index
    %c0_92 = arith.constant 0 : index
    %77 = vector.load %arg4[%c0_90, %c6, %c0_91, %c0_92] : memref<1x8x4x16xbf16, #tpu.memory_space<vmem>>, vector<1x1x4x16xbf16>
    %78 = vector.shape_cast %77 : vector<1x1x4x16xbf16> to vector<4x16xbf16>
    %cst_93 = arith.constant dense<0.000000e+00> : vector<8x16xf32>
    %79 = tpu.matmul %8, %78, %cst_93 {dimension_numbers = #tpu.dot_dimension_numbers<[1], [0], [0], [1], [0, 0, 1, 1], [], []>} : vector<8x4xbf16>, vector<4x16xbf16>, vector<8x16xf32> -> vector<8x16xf32>
    %80 = arith.addf %76, %79 : vector<8x16xf32>
    %c0_94 = arith.constant 0 : index
    %c4_95 = arith.constant 4 : index
    %c0_96 = arith.constant 0 : index
    %c0_97 = arith.constant 0 : index
    %81 = vector.load %arg5[%c0_94, %c4_95, %c0_96, %c0_97] : memref<1x8x8x16xf32, #tpu.memory_space<vmem>>, vector<1x1x8x16xf32>
    %82 = vector.shape_cast %81 : vector<1x1x8x16xf32> to vector<8x16xf32>
    %83 = vector.shape_cast %80 : vector<8x16xf32> to vector<1x1x8x16xf32>
    tpu.vector_store %arg5[%c0_94, %c4_95, %c0_96, %c0_97], %83 {strides = array<i32>} : memref<1x8x8x16xf32, #tpu.memory_space<vmem>>, vector<1x1x8x16xf32>,
    %c0_98 = arith.constant 0 : index
    %c5_99 = arith.constant 5 : index
    %c0_100 = arith.constant 0 : index
    %c0_101 = arith.constant 0 : index
    %84 = vector.load %arg4[%c0_98, %c5_99, %c0_100, %c0_101] : memref<1x8x4x16xbf16, #tpu.memory_space<vmem>>, vector<1x1x4x16xbf16>
    %85 = vector.shape_cast %84 : vector<1x1x4x16xbf16> to vector<4x16xbf16>
    %cst_102 = arith.constant dense<0.000000e+00> : vector<8x16xf32>
    %86 = tpu.matmul %4, %85, %cst_102 {dimension_numbers = #tpu.dot_dimension_numbers<[1], [0], [0], [1], [0, 0, 1, 1], [], []>} : vector<8x4xbf16>, vector<4x16xbf16>, vector<8x16xf32> -> vector<8x16xf32>
    %87 = arith.addf %2, %86 : vector<8x16xf32>
    %c0_103 = arith.constant 0 : index
    %c6_104 = arith.constant 6 : index
    %c0_105 = arith.constant 0 : index
    %c0_106 = arith.constant 0 : index
    %88 = vector.load %arg4[%c0_103, %c6_104, %c0_105, %c0_106] : memref<1x8x4x16xbf16, #tpu.memory_space<vmem>>, vector<1x1x4x16xbf16>
    %89 = vector.shape_cast %88 : vector<1x1x4x16xbf16> to vector<4x16xbf16>
    %cst_107 = arith.constant dense<0.000000e+00> : vector<8x16xf32>
    %90 = tpu.matmul %6, %89, %cst_107 {dimension_numbers = #tpu.dot_dimension_numbers<[1], [0], [0], [1], [0, 0, 1, 1], [], []>} : vector<8x4xbf16>, vector<4x16xbf16>, vector<8x16xf32> -> vector<8x16xf32>
    %91 = arith.addf %87, %90 : vector<8x16xf32>
    %c0_108 = arith.constant 0 : index
    %c7 = arith.constant 7 : index
    %c0_109 = arith.constant 0 : index
    %c0_110 = arith.constant 0 : index
    %92 = vector.load %arg4[%c0_108, %c7, %c0_109, %c0_110] : memref<1x8x4x16xbf16, #tpu.memory_space<vmem>>, vector<1x1x4x16xbf16>
    %93 = vector.shape_cast %92 : vector<1x1x4x16xbf16> to vector<4x16xbf16>
    %cst_111 = arith.constant dense<0.000000e+00> : vector<8x16xf32>
    %94 = tpu.matmul %8, %93, %cst_111 {dimension_numbers = #tpu.dot_dimension_numbers<[1], [0], [0], [1], [0, 0, 1, 1], [], []>} : vector<8x4xbf16>, vector<4x16xbf16>, vector<8x16xf32> -> vector<8x16xf32>
    %95 = arith.addf %91, %94 : vector<8x16xf32>
    %c0_112 = arith.constant 0 : index
    %c5_113 = arith.constant 5 : index
    %c0_114 = arith.constant 0 : index
    %c0_115 = arith.constant 0 : index
    %96 = vector.load %arg5[%c0_112, %c5_113, %c0_114, %c0_115] : memref<1x8x8x16xf32, #tpu.memory_space<vmem>>, vector<1x1x8x16xf32>
    %97 = vector.shape_cast %96 : vector<1x1x8x16xf32> to vector<8x16xf32>
    %98 = vector.shape_cast %95 : vector<8x16xf32> to vector<1x1x8x16xf32>
    tpu.vector_store %arg5[%c0_112, %c5_113, %c0_114, %c0_115], %98 {strides = array<i32>} : memref<1x8x8x16xf32, #tpu.memory_space<vmem>>, vector<1x1x8x16xf32>,
    %c0_116 = arith.constant 0 : index
    %c6_117 = arith.constant 6 : index
    %c0_118 = arith.constant 0 : index
    %c0_119 = arith.constant 0 : index
    %99 = vector.load %arg4[%c0_116, %c6_117, %c0_118, %c0_119] : memref<1x8x4x16xbf16, #tpu.memory_space<vmem>>, vector<1x1x4x16xbf16>
    %100 = vector.shape_cast %99 : vector<1x1x4x16xbf16> to vector<4x16xbf16>
    %cst_120 = arith.constant dense<0.000000e+00> : vector<8x16xf32>
    %101 = tpu.matmul %4, %100, %cst_120 {dimension_numbers = #tpu.dot_dimension_numbers<[1], [0], [0], [1], [0, 0, 1, 1], [], []>} : vector<8x4xbf16>, vector<4x16xbf16>, vector<8x16xf32> -> vector<8x16xf32>
    %102 = arith.addf %2, %101 : vector<8x16xf32>
    %c0_121 = arith.constant 0 : index
    %c7_122 = arith.constant 7 : index
    %c0_123 = arith.constant 0 : index
    %c0_124 = arith.constant 0 : index
    %103 = vector.load %arg4[%c0_121, %c7_122, %c0_123, %c0_124] : memref<1x8x4x16xbf16, #tpu.memory_space<vmem>>, vector<1x1x4x16xbf16>
    %104 = vector.shape_cast %103 : vector<1x1x4x16xbf16> to vector<4x16xbf16>
    %cst_125 = arith.constant dense<0.000000e+00> : vector<8x16xf32>
    %105 = tpu.matmul %6, %104, %cst_125 {dimension_numbers = #tpu.dot_dimension_numbers<[1], [0], [0], [1], [0, 0, 1, 1], [], []>} : vector<8x4xbf16>, vector<4x16xbf16>, vector<8x16xf32> -> vector<8x16xf32>
    %106 = arith.addf %102, %105 : vector<8x16xf32>
    %c0_126 = arith.constant 0 : index
    %c0_127 = arith.constant 0 : index
    %c0_128 = arith.constant 0 : index
    %c0_129 = arith.constant 0 : index
    %107 = vector.load %arg4[%c0_126, %c0_127, %c0_128, %c0_129] : memref<1x8x4x16xbf16, #tpu.memory_space<vmem>>, vector<1x1x4x16xbf16>
    %108 = vector.shape_cast %107 : vector<1x1x4x16xbf16> to vector<4x16xbf16>
    %cst_130 = arith.constant dense<0.000000e+00> : vector<8x16xf32>
    %109 = tpu.matmul %8, %108, %cst_130 {dimension_numbers = #tpu.dot_dimension_numbers<[1], [0], [0], [1], [0, 0, 1, 1], [], []>} : vector<8x4xbf16>, vector<4x16xbf16>, vector<8x16xf32> -> vector<8x16xf32>
    %110 = arith.addf %106, %109 : vector<8x16xf32>
    %c0_131 = arith.constant 0 : index
    %c6_132 = arith.constant 6 : index
    %c0_133 = arith.constant 0 : index
    %c0_134 = arith.constant 0 : index
    %111 = vector.load %arg5[%c0_131, %c6_132, %c0_133, %c0_134] : memref<1x8x8x16xf32, #tpu.memory_space<vmem>>, vector<1x1x8x16xf32>
    %112 = vector.shape_cast %111 : vector<1x1x8x16xf32> to vector<8x16xf32>
    %113 = vector.shape_cast %110 : vector<8x16xf32> to vector<1x1x8x16xf32>
    tpu.vector_store %arg5[%c0_131, %c6_132, %c0_133, %c0_134], %113 {strides = array<i32>} : memref<1x8x8x16xf32, #tpu.memory_space<vmem>>, vector<1x1x8x16xf32>,
    %c0_135 = arith.constant 0 : index
    %c7_136 = arith.constant 7 : index
    %c0_137 = arith.constant 0 : index
    %c0_138 = arith.constant 0 : index
    %114 = vector.load %arg4[%c0_135, %c7_136, %c0_137, %c0_138] : memref<1x8x4x16xbf16, #tpu.memory_space<vmem>>, vector<1x1x4x16xbf16>
    %115 = vector.shape_cast %114 : vector<1x1x4x16xbf16> to vector<4x16xbf16>
    %cst_139 = arith.constant dense<0.000000e+00> : vector<8x16xf32>
    %116 = tpu.matmul %4, %115, %cst_139 {dimension_numbers = #tpu.dot_dimension_numbers<[1], [0], [0], [1], [0, 0, 1, 1], [], []>} : vector<8x4xbf16>, vector<4x16xbf16>, vector<8x16xf32> -> vector<8x16xf32>
    %117 = arith.addf %2, %116 : vector<8x16xf32>
    %c0_140 = arith.constant 0 : index
    %c0_141 = arith.constant 0 : index
    %c0_142 = arith.constant 0 : index
    %c0_143 = arith.constant 0 : index
    %118 = vector.load %arg4[%c0_140, %c0_141, %c0_142, %c0_143] : memref<1x8x4x16xbf16, #tpu.memory_space<vmem>>, vector<1x1x4x16xbf16>
    %119 = vector.shape_cast %118 : vector<1x1x4x16xbf16> to vector<4x16xbf16>
    %cst_144 = arith.constant dense<0.000000e+00> : vector<8x16xf32>
    %120 = tpu.matmul %6, %119, %cst_144 {dimension_numbers = #tpu.dot_dimension_numbers<[1], [0], [0], [1], [0, 0, 1, 1], [], []>} : vector<8x4xbf16>, vector<4x16xbf16>, vector<8x16xf32> -> vector<8x16xf32>
    %121 = arith.addf %117, %120 : vector<8x16xf32>
    %c0_145 = arith.constant 0 : index
    %c1_146 = arith.constant 1 : index
    %c0_147 = arith.constant 0 : index
    %c0_148 = arith.constant 0 : index
    %122 = vector.load %arg4[%c0_145, %c1_146, %c0_147, %c0_148] : memref<1x8x4x16xbf16, #tpu.memory_space<vmem>>, vector<1x1x4x16xbf16>
    %123 = vector.shape_cast %122 : vector<1x1x4x16xbf16> to vector<4x16xbf16>
    %cst_149 = arith.constant dense<0.000000e+00> : vector<8x16xf32>
    %124 = tpu.matmul %8, %123, %cst_149 {dimension_numbers = #tpu.dot_dimension_numbers<[1], [0], [0], [1], [0, 0, 1, 1], [], []>} : vector<8x4xbf16>, vector<4x16xbf16>, vector<8x16xf32> -> vector<8x16xf32>
    %125 = arith.addf %121, %124 : vector<8x16xf32>
    %c0_150 = arith.constant 0 : index
    %c7_151 = arith.constant 7 : index
    %c0_152 = arith.constant 0 : index
    %c0_153 = arith.constant 0 : index
    %126 = vector.load %arg5[%c0_150, %c7_151, %c0_152, %c0_153] : memref<1x8x8x16xf32, #tpu.memory_space<vmem>>, vector<1x1x8x16xf32>
    %127 = vector.shape_cast %126 : vector<1x1x8x16xf32> to vector<8x16xf32>
    %128 = vector.shape_cast %125 : vector<8x16xf32> to vector<1x1x8x16xf32>
    tpu.vector_store %arg5[%c0_150, %c7_151, %c0_152, %c0_153], %128 {strides = array<i32>} : memref<1x8x8x16xf32, #tpu.memory_space<vmem>>, vector<1x1x8x16xf32>,
    return
  }
  func.func @transform_0(%arg0: i32, %arg1: i32) -> (i32, i32, i32) {
    %c0_i32 = arith.constant 0 : i32
    %c0_i32_0 = arith.constant 0 : i32
    %c0_i32_1 = arith.constant 0 : i32
    %c0_i32_2 = arith.constant 0 : i32
    return %c0_i32, %c0_i32_0, %c0_i32_1 : i32, i32, i32
  }
  func.func @transform_1(%arg0: i32, %arg1: i32) -> (i32, i32) {
    %c0_i32 = arith.constant 0 : i32
    %c0_i32_0 = arith.constant 0 : i32
    %c0_i32_1 = arith.constant 0 : i32
    return %c0_i32, %c0_i32_0 : i32, i32
  }
  func.func @transform_2(%arg0: i32, %arg1: i32) -> (i32, i32, i32, i32) {
    %c0_i32 = arith.constant 0 : i32
    %c0_i32_0 = arith.constant 0 : i32
    %c0_i32_1 = arith.constant 0 : i32
    return %arg0, %c0_i32, %c0_i32_0, %arg1 : i32, i32, i32, i32
  }
  func.func @transform_3(%arg0: i32, %arg1: i32) -> (i32, i32, i32, i32) {
    %c0_i32 = arith.constant 0 : i32
    %c0_i32_0 = arith.constant 0 : i32
    %c0_i32_1 = arith.constant 0 : i32
    return %arg0, %c0_i32, %c0_i32_0, %arg1 : i32, i32, i32, i32
  }
}

</mosaic_0001>

<llo_original>
// kernel: tpu_custom_call.1
$region0: #{tpu_custom_call.1}
  #allocation0 [shape = 'u32[]', space=smem, size = 0x4, offset = 0x4, fixed_abs, tag = 'smem constant byte address 0x4 - core index']
  #allocation1 [shape = 'u32[72,128]{1,0:T(1,128)}', space=vmem, size = 0x9000, scoped, tag = 'internal scratch']
  %s0 = inlined_call_operand.vmem [shape: bf16[3,8,4], index: 0, kind: input, shape index: {}]
  %s1 = inlined_call_operand.vmem [shape: f32[8,1], index: 1, kind: input, shape index: {}]
  %s2 = inlined_call_operand.hbm [shape: bf16[2,8,4,16], index: 2, kind: input, shape index: {}]
  %s3 = inlined_call_operand.hbm [shape: f32[2,8,8,16], index: 3, kind: output, shape index: {}]
  %s4 = sld [smem:[#allocation0]]
  $region49: #{tpu_custom_call.1} parent=0
    _
  %s6 = ssub.s32 1, %s4
  %s7 = scalar_select 0, %s6, %s4
  $region1: #{tpu_custom_call.1} parent=0
    #allocation2 [shape = 'u8[16384]{0}', space=vmem, size = 0x4000, scoped, tag = 'input window, operand 2']
    #allocation3 [shape = 's32[2]{0}', space=sflag, size = 0x8, scoped, tag = 'scoped memory for tpu_custom_call.1']
    #allocation4 [shape = 's32[2]{0}', space=sflag, size = 0x8, scoped, tag = 'scoped memory for tpu_custom_call.1']
    #allocation5 [shape = 'u8[65536]{0}', space=vmem, size = 0x10000, scoped, tag = 'output window, operand 0']
    %8 = vsyncpa [#allocation3], 0
    %s9 = scalar_lea.sflag [#allocation3], 1
    %10 = vsyncpa %s9, 0
    %11 = vsyncpa [#allocation4], 0
    %s12 = scalar_lea.sflag [#allocation4], 1
    %13 = vsyncpa %s12, 0
    loop: start=0, step=1, limit=4
    $region2: #{tpu_custom_call.1} parent=1 // loop_pre_header
      _
    $region3: #{tpu_custom_call.1} parent=1 // loop_header
      %s15 = sphi 0, %s19
      %p16 = scmp.ge.s32.totalorder %s15, 4
      %s22 = sphi 0, %s34
      %s23 = sphi 0, %s30
      %s24 = sphi 0, %s22
      %s25 = sphi 0, %s23
      %s26 = sphi 0, %s24
      %s27 = sphi 0, %s25
      %s35 = sphi 0, %s35
      %s37 = sphi 0, %s35
      %s38 = sphi 0, %s37
      %s52 = sphi 0, %s38
      %s56 = sphi 0, %s56
      %s58 = sphi 0, %s56
      %s59 = sphi 0, %s58
      %s73 = sphi 0, %s59
      %s81 = sphi 0, %s83
      %s84 = sphi 0, %s81
      %s85 = sphi 0, %s84
      %s101 = sphi 0, %s85
      %s109 = sphi 0, %s111
      %s112 = sphi 0, %s109
      %s113 = sphi 0, %s112
      %s129 = sphi 0, %s113
    $region4: #{tpu_custom_call.1} parent=1 // loop_header_branch
      %18 = sbr.rel (%p16) target = $region8
    $region5: #{tpu_custom_call.1} parent=1 // loop_body
      %s20 = ssub.s32 %s15, 1
      %s21 = ssub.s32 %s15, 2
      %s28 = sadd.s32 1, %s23
      %p29 = scmp.ge.s32.totalorder %s28, 1
      %s30 = scalar_select %p29, 0, %s28
      %s31 = sadd.s32 1, %s22
      %s32 = scalar_select %p29, %s31, %s22
      %p33 = scmp.ge.s32.totalorder %s32, 2
      %s34 = scalar_select %p33, 0, %s32
      %s36 = sadd.s32 %s35, 1
      %p39 = scmp.eq.s32.totalorder %s15, 1
      %p40 = scmp.ne.s32.totalorder %s35, %s37
      %p41 = scmp.eq.s32.totalorder %s15, 0
      %p42 = por %p40, %p41
      %p43 = scmp.ne.s32.totalorder %s35, %s37
      %p44 = scmp.eq.s32.totalorder %s20, 1
      %p45 = por %p43, %p44
      %p46 = scmp.ne.s32.totalorder %s37, %s38
      %p47 = scmp.eq.s32.totalorder %s20, 0
      %p48 = por %p46, %p47
      %p49 = scmp.ne.s32.totalorder %s37, %s38
      %p50 = scmp.eq.s32.totalorder %s21, 1
      %p51 = por %p49, %p50
      %p53 = scmp.ne.s32.totalorder %s38, %s52
      %p54 = scmp.eq.s32.totalorder %s21, 0
      %p55 = por %p53, %p54
      %s57 = sadd.s32 %s56, 1
      %p60 = scmp.eq.s32.totalorder %s15, 1
      %p61 = scmp.ne.s32.totalorder %s56, %s58
      %p62 = scmp.eq.s32.totalorder %s15, 0
      %p63 = por %p61, %p62
      %p64 = scmp.ne.s32.totalorder %s56, %s58
      %p65 = scmp.eq.s32.totalorder %s20, 1
      %p66 = por %p64, %p65
      %p67 = scmp.ne.s32.totalorder %s58, %s59
      %p68 = scmp.eq.s32.totalorder %s20, 0
      %p69 = por %p67, %p68
      %p70 = scmp.ne.s32.totalorder %s58, %s59
      %p71 = scmp.eq.s32.totalorder %s21, 1
      %p72 = por %p70, %p71
      %p74 = scmp.ne.s32.totalorder %s59, %s73
      %p75 = scmp.eq.s32.totalorder %s21, 0
      %p76 = por %p74, %p75
      %s77 = ssub.s32 %s22, %s34
      %s78 = ssub.s32 %s23, %s30
      %s79 = sor.u32 %s77, %s78
      %p80 = scmp.eq.s32.totalorder %s79, 0
      %s82 = sadd.s32 %s81, 1
      %s83 = scalar_select %p80, %s81, %s82
      %p86 = pneg %p80
      %p87 = scmp.eq.s32.totalorder %s15, 1
      %p88 = por %p86, %p87
      %p89 = scmp.ne.s32.totalorder %s81, %s84
      %p90 = scmp.eq.s32.totalorder %s15, 0
      %p91 = por %p89, %p90
      %p92 = scmp.ne.s32.totalorder %s81, %s84
      %p93 = scmp.eq.s32.totalorder %s20, 1
      %p94 = por %p92, %p93
      %p95 = scmp.ne.s32.totalorder %s84, %s85
      %p96 = scmp.eq.s32.totalorder %s20, 0
      %p97 = por %p95, %p96
      %p98 = scmp.ne.s32.totalorder %s84, %s85
      %p99 = scmp.eq.s32.totalorder %s21, 1
      %p100 = por %p98, %p99
      %p102 = scmp.ne.s32.totalorder %s85, %s101
      %p103 = scmp.eq.s32.totalorder %s21, 0
      %p104 = por %p102, %p103
      %s105 = ssub.s32 %s22, %s34
      %s106 = ssub.s32 %s23, %s30
      %s107 = sor.u32 %s105, %s106
      %p108 = scmp.eq.s32.totalorder %s107, 0
      %s110 = sadd.s32 %s109, 1
      %s111 = scalar_select %p108, %s109, %s110
      %p114 = pneg %p108
      %p115 = scmp.eq.s32.totalorder %s15, 1
      %p116 = por %p114, %p115
      %p117 = scmp.ne.s32.totalorder %s109, %s112
      %p118 = scmp.eq.s32.totalorder %s15, 0
      %p119 = por %p117, %p118
      %p120 = scmp.ne.s32.totalorder %s109, %s112
      %p121 = scmp.eq.s32.totalorder %s20, 1
      %p122 = por %p120, %p121
      %p123 = scmp.ne.s32.totalorder %s112, %s113
      %p124 = scmp.eq.s32.totalorder %s20, 0
      %p125 = por %p123, %p124
      %p126 = scmp.ne.s32.totalorder %s112, %s113
      %p127 = scmp.eq.s32.totalorder %s21, 1
      %p128 = por %p126, %p127
      %p130 = scmp.ne.s32.totalorder %s113, %s129
      %p131 = scmp.eq.s32.totalorder %s21, 0
      %p132 = por %p130, %p131
      %p133 = scmp.le.s32.totalorder 1, %s15
      %p134 = scmp.lt.s32.totalorder %s15, 3
      %p135 = pnand %p133, %p134
      %p136 = pneg %p135
      // Predicated region
      $region9: #{tpu_custom_call.1} parent=5 // pred_check
        _
      $region10: #{tpu_custom_call.1} parent=5 // pred_check_branch
        %138 = sbr.rel (%p135) target = $region12
      $region11: #{tpu_custom_call.1} parent=5 // pred_region
        %s139 = ssub.s32 %s15, 1
        // Predicated region
        $region13: #{tpu_custom_call.1} parent=11 // pred_check
          %p140 = pneg %p48
        $region14: #{tpu_custom_call.1} parent=11 // pred_check_branch
          %142 = sbr.rel (%p140) target = $region16
        $region15: #{tpu_custom_call.1} parent=11 // pred_region
          _
        $region16: #{tpu_custom_call.1} parent=11 // pred_fallthru
          _
        // Predicated region
        $region17: #{tpu_custom_call.1} parent=11 // pred_check
          %p143 = pneg %p69
        $region18: #{tpu_custom_call.1} parent=11 // pred_check_branch
          %145 = sbr.rel (%p143) target = $region20
        $region19: #{tpu_custom_call.1} parent=11 // pred_region
          _
        $region20: #{tpu_custom_call.1} parent=11 // pred_fallthru
          _
      $region12: #{tpu_custom_call.1} parent=5 // pred_fallthru
        _
      %p146 = scmp.lt.s32.totalorder %s15, 2
      // Predicated region
      $region21: #{tpu_custom_call.1} parent=5 // pred_check
        %p147 = pneg %p146
      $region22: #{tpu_custom_call.1} parent=5 // pred_check_branch
        %149 = sbr.rel (%p147) target = $region24
      $region23: #{tpu_custom_call.1} parent=5 // pred_region
        // Predicated region
        $region25: #{tpu_custom_call.1} parent=23 // pred_check
          %p150 = pneg %p91
        $region26: #{tpu_custom_call.1} parent=23 // pred_check_branch
          %152 = sbr.rel (%p150) target = $region28
        $region27: #{tpu_custom_call.1} parent=23 // pred_region
          %s153 = sand.u32 %s81, 1
          %s154 = scalar_lea.sflag [#allocation3], %s153
          %s155 = sand.u32 %s81, 1
          %s156 = smul.addr %s155, 16
          %s157 = scalar_lea.vmem [#allocation2], %s156
          %159 = vsyncadd %s154, 0
          %s160 = smul.addr %s22, 8
          %s161 = sadd.s32 %s23, %s160
          %s162 = smul.addr %s161, 2
          %s163 = scalar_lea.hbm %s2, %s162
          %s164 = sshll.u32 %s163, 4
          %s165 = int_to_ptr.hbm [resolvable:$true] %s164
          %s166 = sshll.u32 %s157, 4
          %s167 = int_to_ptr.vmem [resolvable:$true] %s166
          %172 = dma.hbm_to_vmem [thread:$0]  %s165, 256, %s167, %s154, 32, 32, 2
        $region28: #{tpu_custom_call.1} parent=23 // pred_fallthru
          _
      $region24: #{tpu_custom_call.1} parent=5 // pred_fallthru
        _
      %p173 = scmp.le.s32.totalorder 1, %s15
      %p174 = scmp.lt.s32.totalorder %s15, 3
      %p175 = pnand %p173, %p174
      %p176 = pneg %p175
      // Predicated region
      $region29: #{tpu_custom_call.1} parent=5 // pred_check
        _
      $region30: #{tpu_custom_call.1} parent=5 // pred_check_branch
        %178 = sbr.rel (%p175) target = $region32
      $region31: #{tpu_custom_call.1} parent=5 // pred_region
        %s179 = ssub.s32 %s15, 1
        %s180 = sand.u32 %s84, 1
        %s181 = scalar_lea.sflag [#allocation3], %s180
        %s182 = sand.u32 %s84, 1
        %s183 = smul.addr %s182, 16
        %s184 = scalar_lea.vmem [#allocation2], %s183
        // Predicated region
        $region33: #{tpu_custom_call.1} parent=31 // pred_check
          %p185 = pneg %p97
        $region34: #{tpu_custom_call.1} parent=31 // pred_check_branch
          %187 = sbr.rel (%p185) target = $region36
        $region35: #{tpu_custom_call.1} parent=31 // pred_region
          %189 = dma.done %s181, 256
        $region36: #{tpu_custom_call.1} parent=31 // pred_fallthru
          _
        %p190 = pneg %p48
        %p191 = pneg %p45
        %p192 = pneg %p69
        %p193 = pneg %p66
        %s194 = sand.u32 %s84, 1
        %s195 = scalar_lea.sflag [#allocation3], %s194
        %s196 = sand.u32 %s84, 1
        %s197 = smul.addr %s196, 16
        %s198 = scalar_lea.vmem [#allocation2], %s197
        %p199 = pneg %p97
        %p200 = pneg %p94
        %p201 = pneg %p125
        %p202 = pneg %p122
        %s203 = sand.u32 %s112, 1
        %s204 = scalar_lea.sflag [#allocation4], %s203
        %s205 = sand.u32 %s112, 1
        %s206 = smul.addr %s205, 64
        %s207 = scalar_lea.vmem [#allocation5], %s206
        %v209 = vld [vmem:[%s1] sm:$0xff]
        %211 = vset.pattern.permute.xlu0 0
        %212 = vperm.xlu0 %211, %v209
        %v213 = vpop.permute.xlu0 %212
        %v215 = vld [vmem:[%s0] sm:$0xf]
        %s216 = scalar_lea.vmem %s0, 4
        %v217 = vld [vmem:[%s216] sm:$0xf]
        %s218 = scalar_lea.vmem %s0, 8
        %v219 = vld [vmem:[%s218] sm:$0xf]
        %v220 = vld [vmem:[%s184] sm:$0x3]
        %vm221 = vcmask 31744
        %v223 = vsel %vm221, %v215, 0
        %vm225 = vcmask 1041408
        %v227 = vsel %vm225, %v220, 0
        %229 = vmatpush.bf16.msra.mxu0 0
        %230 = vmatpush.bf16.msra.mxu0 0
        %231 = vmatpush.bf16.msra.mxu0 0
        %232 = vmatpush.bf16.msra.mxu0 0
        %233 = vmatpush.bf16.msra.mxu0 0
        %234 = vmatpush.bf16.msra.mxu0 0
        %235 = vmatpush.bf16.msra.mxu0 0
        %236 = vmatpush.bf16.msra.mxu0 %v227
        %237 = vmatmul.bf16.gmra.mxu0 %v223
        %v238 = vpop.f32.mrf.mxu0
        %v239 = vadd.f32 0.0, %v238
        %v240 = vpop.f32.mrf.mxu0
        %241 = vdwg.mxu0
        %v242 = vadd.f32 %v213, %v239
        %s243 = scalar_lea.vmem %s184, 2 [#allocation2]
        %v244 = vld [vmem:[%s243] sm:$0x3]
        %v246 = vsel %vm221, %v217, 0
        %v249 = vsel %vm225, %v244, 0
        %251 = vmatpush.bf16.msra.mxu0 0
        %252 = vmatpush.bf16.msra.mxu0 0
        %253 = vmatpush.bf16.msra.mxu0 0
        %254 = vmatpush.bf16.msra.mxu0 0
        %255 = vmatpush.bf16.msra.mxu0 0
        %256 = vmatpush.bf16.msra.mxu0 0
        %257 = vmatpush.bf16.msra.mxu0 0
        %258 = vmatpush.bf16.msra.mxu0 %v249
        %259 = vmatmul.bf16.gmra.mxu0 %v246
        %v260 = vpop.f32.mrf.mxu0
        %v261 = vadd.f32 0.0, %v260
        %v262 = vpop.f32.mrf.mxu0
        %263 = vdwg.mxu0
        %v264 = vadd.f32 %v242, %v261
        %s265 = scalar_lea.vmem %s184, 4 [#allocation2]
        %v266 = vld [vmem:[%s265] sm:$0x3]
        %v268 = vsel %vm221, %v219, 0
        %v271 = vsel %vm225, %v266, 0
        %273 = vmatpush.bf16.msra.mxu0 0
        %274 = vmatpush.bf16.msra.mxu0 0
        %275 = vmatpush.bf16.msra.mxu0 0
        %276 = vmatpush.bf16.msra.mxu0 0
        %277 = vmatpush.bf16.msra.mxu0 0
        %278 = vmatpush.bf16.msra.mxu0 0
        %279 = vmatpush.bf16.msra.mxu0 0
        %280 = vmatpush.bf16.msra.mxu0 %v271
        %281 = vmatmul.bf16.gmra.mxu0 %v268
        %v282 = vpop.f32.mrf.mxu0
        %v283 = vadd.f32 0.0, %v282
        %v284 = vpop.f32.mrf.mxu0
        %285 = vdwg.mxu0
        %v286 = vadd.f32 %v264, %v283
        %vm287 = vcmask 130048
        %288 = vst.msk [vmem:[%s207] sm:$0xff] %vm287, %v286
        %v289 = vld [vmem:[%s243] sm:$0x3]
        %v291 = vsel %vm225, %v289, 0
        %293 = vmatpush.bf16.msra.mxu0 0
        %294 = vmatpush.bf16.msra.mxu0 0
        %295 = vmatpush.bf16.msra.mxu0 0
        %296 = vmatpush.bf16.msra.mxu0 0
        %297 = vmatpush.bf16.msra.mxu0 0
        %298 = vmatpush.bf16.msra.mxu0 0
        %299 = vmatpush.bf16.msra.mxu0 0
        %300 = vmatpush.bf16.msra.mxu0 %v291
        %301 = vmatmul.bf16.gmra.mxu0 %v223
        %v302 = vpop.f32.mrf.mxu0
        %v303 = vadd.f32 0.0, %v302
        %v304 = vpop.f32.mrf.mxu0
        %305 = vdwg.mxu0
        %v306 = vadd.f32 %v213, %v303
        %v307 = vld [vmem:[%s265] sm:$0x3]
        %v309 = vsel %vm225, %v307, 0
        %311 = vmatpush.bf16.msra.mxu0 0
        %312 = vmatpush.bf16.msra.mxu0 0
        %313 = vmatpush.bf16.msra.mxu0 0
        %314 = vmatpush.bf16.msra.mxu0 0
        %315 = vmatpush.bf16.msra.mxu0 0
        %316 = vmatpush.bf16.msra.mxu0 0
        %317 = vmatpush.bf16.msra.mxu0 0
        %318 = vmatpush.bf16.msra.mxu0 %v309
        %319 = vmatmul.bf16.gmra.mxu0 %v246
        %v320 = vpop.f32.mrf.mxu0
        %v321 = vadd.f32 0.0, %v320
        %v322 = vpop.f32.mrf.mxu0
        %323 = vdwg.mxu0
        %v324 = vadd.f32 %v306, %v321
        %s325 = scalar_lea.vmem %s184, 6 [#allocation2]
        %v326 = vld [vmem:[%s325] sm:$0x3]
        %v328 = vsel %vm225, %v326, 0
        %330 = vmatpush.bf16.msra.mxu0 0
        %331 = vmatpush.bf16.msra.mxu0 0
        %332 = vmatpush.bf16.msra.mxu0 0
        %333 = vmatpush.bf16.msra.mxu0 0
        %334 = vmatpush.bf16.msra.mxu0 0
        %335 = vmatpush.bf16.msra.mxu0 0
        %336 = vmatpush.bf16.msra.mxu0 0
        %337 = vmatpush.bf16.msra.mxu0 %v328
        %338 = vmatmul.bf16.gmra.mxu0 %v268
        %v339 = vpop.f32.mrf.mxu0
        %v340 = vadd.f32 0.0, %v339
        %v341 = vpop.f32.mrf.mxu0
        %342 = vdwg.mxu0
        %v343 = vadd.f32 %v324, %v340
        %s344 = scalar_lea.vmem %s207, 8 [#allocation5]
        %345 = vst.msk [vmem:[%s344] sm:$0xff] %vm287, %v343
        %v346 = vld [vmem:[%s265] sm:$0x3]
        %v348 = vsel %vm225, %v346, 0
        %350 = vmatpush.bf16.msra.mxu0 0
        %351 = vmatpush.bf16.msra.mxu0 0
        %352 = vmatpush.bf16.msra.mxu0 0
        %353 = vmatpush.bf16.msra.mxu0 0
        %354 = vmatpush.bf16.msra.mxu0 0
        %355 = vmatpush.bf16.msra.mxu0 0
        %356 = vmatpush.bf16.msra.mxu0 0
        %357 = vmatpush.bf16.msra.mxu0 %v348
        %358 = vmatmul.bf16.gmra.mxu0 %v223
        %v359 = vpop.f32.mrf.mxu0
        %v360 = vadd.f32 0.0, %v359
        %v361 = vpop.f32.mrf.mxu0
        %362 = vdwg.mxu0
        %v363 = vadd.f32 %v213, %v360
        %v364 = vld [vmem:[%s325] sm:$0x3]
        %v366 = vsel %vm225, %v364, 0
        %368 = vmatpush.bf16.msra.mxu0 0
        %369 = vmatpush.bf16.msra.mxu0 0
        %370 = vmatpush.bf16.msra.mxu0 0
        %371 = vmatpush.bf16.msra.mxu0 0
        %372 = vmatpush.bf16.msra.mxu0 0
        %373 = vmatpush.bf16.msra.mxu0 0
        %374 = vmatpush.bf16.msra.mxu0 0
        %375 = vmatpush.bf16.msra.mxu0 %v366
        %376 = vmatmul.bf16.gmra.mxu0 %v246
        %v377 = vpop.f32.mrf.mxu0
        %v378 = vadd.f32 0.0, %v377
        %v379 = vpop.f32.mrf.mxu0
        %380 = vdwg.mxu0
        %v381 = vadd.f32 %v363, %v378
        %s382 = scalar_lea.vmem %s184, 8 [#allocation2]
        %v383 = vld [vmem:[%s382] sm:$0x3]
        %v385 = vsel %vm225, %v383, 0
        %387 = vmatpush.bf16.msra.mxu0 0
        %388 = vmatpush.bf16.msra.mxu0 0
        %389 = vmatpush.bf16.msra.mxu0 0
        %390 = vmatpush.bf16.msra.mxu0 0
        %391 = vmatpush.bf16.msra.mxu0 0
        %392 = vmatpush.bf16.msra.mxu0 0
        %393 = vmatpush.bf16.msra.mxu0 0
        %394 = vmatpush.bf16.msra.mxu0 %v385
        %395 = vmatmul.bf16.gmra.mxu0 %v268
        %v396 = vpop.f32.mrf.mxu0
        %v397 = vadd.f32 0.0, %v396
        %v398 = vpop.f32.mrf.mxu0
        %399 = vdwg.mxu0
        %v400 = vadd.f32 %v381, %v397
        %s401 = scalar_lea.vmem %s207, 16 [#allocation5]
        %402 = vst.msk [vmem:[%s401] sm:$0xff] %vm287, %v400
        %v403 = vld [vmem:[%s325] sm:$0x3]
        %v405 = vsel %vm225, %v403, 0
        %407 = vmatpush.bf16.msra.mxu0 0
        %408 = vmatpush.bf16.msra.mxu0 0
        %409 = vmatpush.bf16.msra.mxu0 0
        %410 = vmatpush.bf16.msra.mxu0 0
        %411 = vmatpush.bf16.msra.mxu0 0
        %412 = vmatpush.bf16.msra.mxu0 0
        %413 = vmatpush.bf16.msra.mxu0 0
        %414 = vmatpush.bf16.msra.mxu0 %v405
        %415 = vmatmul.bf16.gmra.mxu0 %v223
        %v416 = vpop.f32.mrf.mxu0
        %v417 = vadd.f32 0.0, %v416
        %v418 = vpop.f32.mrf.mxu0
        %419 = vdwg.mxu0
        %v420 = vadd.f32 %v213, %v417
        %v421 = vld [vmem:[%s382] sm:$0x3]
        %v423 = vsel %vm225, %v421, 0
        %425 = vmatpush.bf16.msra.mxu0 0
        %426 = vmatpush.bf16.msra.mxu0 0
        %427 = vmatpush.bf16.msra.mxu0 0
        %428 = vmatpush.bf16.msra.mxu0 0
        %429 = vmatpush.bf16.msra.mxu0 0
        %430 = vmatpush.bf16.msra.mxu0 0
        %431 = vmatpush.bf16.msra.mxu0 0
        %432 = vmatpush.bf16.msra.mxu0 %v423
        %433 = vmatmul.bf16.gmra.mxu0 %v246
        %v434 = vpop.f32.mrf.mxu0
        %v435 = vadd.f32 0.0, %v434
        %v436 = vpop.f32.mrf.mxu0
        %437 = vdwg.mxu0
        %v438 = vadd.f32 %v420, %v435
        %s439 = scalar_lea.vmem %s184, 10 [#allocation2]
        %v440 = vld [vmem:[%s439] sm:$0x3]
        %v442 = vsel %vm225, %v440, 0
        %444 = vmatpush.bf16.msra.mxu0 0
        %445 = vmatpush.bf16.msra.mxu0 0
        %446 = vmatpush.bf16.msra.mxu0 0
        %447 = vmatpush.bf16.msra.mxu0 0
        %448 = vmatpush.bf16.msra.mxu0 0
        %449 = vmatpush.bf16.msra.mxu0 0
        %450 = vmatpush.bf16.msra.mxu0 0
        %451 = vmatpush.bf16.msra.mxu0 %v442
        %452 = vmatmul.bf16.gmra.mxu0 %v268
        %v453 = vpop.f32.mrf.mxu0
        %v454 = vadd.f32 0.0, %v453
        %v455 = vpop.f32.mrf.mxu0
        %456 = vdwg.mxu0
        %v457 = vadd.f32 %v438, %v454
        %s458 = scalar_lea.vmem %s207, 24 [#allocation5]
        %459 = vst.msk [vmem:[%s458] sm:$0xff] %vm287, %v457
        %v460 = vld [vmem:[%s382] sm:$0x3]
        %v462 = vsel %vm225, %v460, 0
        %464 = vmatpush.bf16.msra.mxu0 0
        %465 = vmatpush.bf16.msra.mxu0 0
        %466 = vmatpush.bf16.msra.mxu0 0
        %467 = vmatpush.bf16.msra.mxu0 0
        %468 = vmatpush.bf16.msra.mxu0 0
        %469 = vmatpush.bf16.msra.mxu0 0
        %470 = vmatpush.bf16.msra.mxu0 0
        %471 = vmatpush.bf16.msra.mxu0 %v462
        %472 = vmatmul.bf16.gmra.mxu0 %v223
        %v473 = vpop.f32.mrf.mxu0
        %v474 = vadd.f32 0.0, %v473
        %v475 = vpop.f32.mrf.mxu0
        %476 = vdwg.mxu0
        %v477 = vadd.f32 %v213, %v474
        %v478 = vld [vmem:[%s439] sm:$0x3]
        %v480 = vsel %vm225, %v478, 0
        %482 = vmatpush.bf16.msra.mxu0 0
        %483 = vmatpush.bf16.msra.mxu0 0
        %484 = vmatpush.bf16.msra.mxu0 0
        %485 = vmatpush.bf16.msra.mxu0 0
        %486 = vmatpush.bf16.msra.mxu0 0
        %487 = vmatpush.bf16.msra.mxu0 0
        %488 = vmatpush.bf16.msra.mxu0 0
        %489 = vmatpush.bf16.msra.mxu0 %v480
        %490 = vmatmul.bf16.gmra.mxu0 %v246
        %v491 = vpop.f32.mrf.mxu0
        %v492 = vadd.f32 0.0, %v491
        %v493 = vpop.f32.mrf.mxu0
        %494 = vdwg.mxu0
        %v495 = vadd.f32 %v477, %v492
        %s496 = scalar_lea.vmem %s184, 12 [#allocation2]
        %v497 = vld [vmem:[%s496] sm:$0x3]
        %v499 = vsel %vm225, %v497, 0
        %501 = vmatpush.bf16.msra.mxu0 0
        %502 = vmatpush.bf16.msra.mxu0 0
        %503 = vmatpush.bf16.msra.mxu0 0
        %504 = vmatpush.bf16.msra.mxu0 0
        %505 = vmatpush.bf16.msra.mxu0 0
        %506 = vmatpush.bf16.msra.mxu0 0
        %507 = vmatpush.bf16.msra.mxu0 0
        %508 = vmatpush.bf16.msra.mxu0 %v499
        %509 = vmatmul.bf16.gmra.mxu0 %v268
        %v510 = vpop.f32.mrf.mxu0
        %v511 = vadd.f32 0.0, %v510
        %v512 = vpop.f32.mrf.mxu0
        %513 = vdwg.mxu0
        %v514 = vadd.f32 %v495, %v511
        %s515 = scalar_lea.vmem %s207, 32 [#allocation5]
        %516 = vst.msk [vmem:[%s515] sm:$0xff] %vm287, %v514
        %v517 = vld [vmem:[%s439] sm:$0x3]
        %v519 = vsel %vm225, %v517, 0
        %521 = vmatpush.bf16.msra.mxu0 0
        %522 = vmatpush.bf16.msra.mxu0 0
        %523 = vmatpush.bf16.msra.mxu0 0
        %524 = vmatpush.bf16.msra.mxu0 0
        %525 = vmatpush.bf16.msra.mxu0 0
        %526 = vmatpush.bf16.msra.mxu0 0
        %527 = vmatpush.bf16.msra.mxu0 0
        %528 = vmatpush.bf16.msra.mxu0 %v519
        %529 = vmatmul.bf16.gmra.mxu0 %v223
        %v530 = vpop.f32.mrf.mxu0
        %v531 = vadd.f32 0.0, %v530
        %v532 = vpop.f32.mrf.mxu0
        %533 = vdwg.mxu0
        %v534 = vadd.f32 %v213, %v531
        %v535 = vld [vmem:[%s496] sm:$0x3]
        %v537 = vsel %vm225, %v535, 0
        %539 = vmatpush.bf16.msra.mxu0 0
        %540 = vmatpush.bf16.msra.mxu0 0
        %541 = vmatpush.bf16.msra.mxu0 0
        %542 = vmatpush.bf16.msra.mxu0 0
        %543 = vmatpush.bf16.msra.mxu0 0
        %544 = vmatpush.bf16.msra.mxu0 0
        %545 = vmatpush.bf16.msra.mxu0 0
        %546 = vmatpush.bf16.msra.mxu0 %v537
        %547 = vmatmul.bf16.gmra.mxu0 %v246
        %v548 = vpop.f32.mrf.mxu0
        %v549 = vadd.f32 0.0, %v548
        %v550 = vpop.f32.mrf.mxu0
        %551 = vdwg.mxu0
        %v552 = vadd.f32 %v534, %v549
        %s553 = scalar_lea.vmem %s184, 14 [#allocation2]
        %v554 = vld [vmem:[%s553] sm:$0x3]
        %v556 = vsel %vm225, %v554, 0
        %558 = vmatpush.bf16.msra.mxu0 0
        %559 = vmatpush.bf16.msra.mxu0 0
        %560 = vmatpush.bf16.msra.mxu0 0
        %561 = vmatpush.bf16.msra.mxu0 0
        %562 = vmatpush.bf16.msra.mxu0 0
        %563 = vmatpush.bf16.msra.mxu0 0
        %564 = vmatpush.bf16.msra.mxu0 0
        %565 = vmatpush.bf16.msra.mxu0 %v556
        %566 = vmatmul.bf16.gmra.mxu0 %v268
        %v567 = vpop.f32.mrf.mxu0
        %v568 = vadd.f32 0.0, %v567
        %v569 = vpop.f32.mrf.mxu0
        %570 = vdwg.mxu0
        %v571 = vadd.f32 %v552, %v568
        %s572 = scalar_lea.vmem %s207, 40 [#allocation5]
        %573 = vst.msk [vmem:[%s572] sm:$0xff] %vm287, %v571
        %v574 = vld [vmem:[%s496] sm:$0x3]
        %v576 = vsel %vm225, %v574, 0
        %578 = vmatpush.bf16.msra.mxu0 0
        %579 = vmatpush.bf16.msra.mxu0 0
        %580 = vmatpush.bf16.msra.mxu0 0
        %581 = vmatpush.bf16.msra.mxu0 0
        %582 = vmatpush.bf16.msra.mxu0 0
        %583 = vmatpush.bf16.msra.mxu0 0
        %584 = vmatpush.bf16.msra.mxu0 0
        %585 = vmatpush.bf16.msra.mxu0 %v576
        %586 = vmatmul.bf16.gmra.mxu0 %v223
        %v587 = vpop.f32.mrf.mxu0
        %v588 = vadd.f32 0.0, %v587
        %v589 = vpop.f32.mrf.mxu0
        %590 = vdwg.mxu0
        %v591 = vadd.f32 %v213, %v588
        %v592 = vld [vmem:[%s553] sm:$0x3]
        %v594 = vsel %vm225, %v592, 0
        %596 = vmatpush.bf16.msra.mxu0 0
        %597 = vmatpush.bf16.msra.mxu0 0
        %598 = vmatpush.bf16.msra.mxu0 0
        %599 = vmatpush.bf16.msra.mxu0 0
        %600 = vmatpush.bf16.msra.mxu0 0
        %601 = vmatpush.bf16.msra.mxu0 0
        %602 = vmatpush.bf16.msra.mxu0 0
        %603 = vmatpush.bf16.msra.mxu0 %v594
        %604 = vmatmul.bf16.gmra.mxu0 %v246
        %v605 = vpop.f32.mrf.mxu0
        %v606 = vadd.f32 0.0, %v605
        %v607 = vpop.f32.mrf.mxu0
        %608 = vdwg.mxu0
        %v609 = vadd.f32 %v591, %v606
        %v610 = vld [vmem:[%s184] sm:$0x3]
        %v612 = vsel %vm225, %v610, 0
        %614 = vmatpush.bf16.msra.mxu0 0
        %615 = vmatpush.bf16.msra.mxu0 0
        %616 = vmatpush.bf16.msra.mxu0 0
        %617 = vmatpush.bf16.msra.mxu0 0
        %618 = vmatpush.bf16.msra.mxu0 0
        %619 = vmatpush.bf16.msra.mxu0 0
        %620 = vmatpush.bf16.msra.mxu0 0
        %621 = vmatpush.bf16.msra.mxu0 %v612
        %622 = vmatmul.bf16.gmra.mxu0 %v268
        %v623 = vpop.f32.mrf.mxu0
        %v624 = vadd.f32 0.0, %v623
        %v625 = vpop.f32.mrf.mxu0
        %626 = vdwg.mxu0
        %v627 = vadd.f32 %v609, %v624
        %s628 = scalar_lea.vmem %s207, 48 [#allocation5]
        %629 = vst.msk [vmem:[%s628] sm:$0xff] %vm287, %v627
        %v630 = vld [vmem:[%s553] sm:$0x3]
        %v632 = vsel %vm225, %v630, 0
        %634 = vmatpush.bf16.msra.mxu0 0
        %635 = vmatpush.bf16.msra.mxu0 0
        %636 = vmatpush.bf16.msra.mxu0 0
        %637 = vmatpush.bf16.msra.mxu0 0
        %638 = vmatpush.bf16.msra.mxu0 0
        %639 = vmatpush.bf16.msra.mxu0 0
        %640 = vmatpush.bf16.msra.mxu0 0
        %641 = vmatpush.bf16.msra.mxu0 %v632
        %642 = vmatmul.bf16.gmra.mxu0 %v223
        %v643 = vpop.f32.mrf.mxu0
        %v644 = vadd.f32 0.0, %v643
        %v645 = vpop.f32.mrf.mxu0
        %646 = vdwg.mxu0
        %v647 = vadd.f32 %v213, %v644
        %v648 = vld [vmem:[%s184] sm:$0x3]
        %v650 = vsel %vm225, %v648, 0
        %652 = vmatpush.bf16.msra.mxu0 0
        %653 = vmatpush.bf16.msra.mxu0 0
        %654 = vmatpush.bf16.msra.mxu0 0
        %655 = vmatpush.bf16.msra.mxu0 0
        %656 = vmatpush.bf16.msra.mxu0 0
        %657 = vmatpush.bf16.msra.mxu0 0
        %658 = vmatpush.bf16.msra.mxu0 0
        %659 = vmatpush.bf16.msra.mxu0 %v650
        %660 = vmatmul.bf16.gmra.mxu0 %v246
        %v661 = vpop.f32.mrf.mxu0
        %v662 = vadd.f32 0.0, %v661
        %v663 = vpop.f32.mrf.mxu0
        %664 = vdwg.mxu0
        %v665 = vadd.f32 %v647, %v662
        %v666 = vld [vmem:[%s243] sm:$0x3]
        %v668 = vsel %vm225, %v666, 0
        %670 = vmatpush.bf16.msra.mxu0 0
        %671 = vmatpush.bf16.msra.mxu0 0
        %672 = vmatpush.bf16.msra.mxu0 0
        %673 = vmatpush.bf16.msra.mxu0 0
        %674 = vmatpush.bf16.msra.mxu0 0
        %675 = vmatpush.bf16.msra.mxu0 0
        %676 = vmatpush.bf16.msra.mxu0 0
        %677 = vmatpush.bf16.msra.mxu0 %v668
        %678 = vmatmul.bf16.gmra.mxu0 %v268
        %v679 = vpop.f32.mrf.mxu0
        %v680 = vadd.f32 0.0, %v679
        %v681 = vpop.f32.mrf.mxu0
        %682 = vdwg.mxu0
        %v683 = vadd.f32 %v665, %v680
        %s684 = scalar_lea.vmem %s207, 56 [#allocation5]
        %685 = vst.msk [vmem:[%s684] sm:$0xff] %vm287, %v683
        %s686 = sand.u32 %s112, 1
        %s687 = scalar_lea.sflag [#allocation4], %s686
        %s688 = sand.u32 %s112, 1
        %s689 = smul.addr %s688, 64
        %s690 = scalar_lea.vmem [#allocation5], %s689
        // Predicated region
        $region37: #{tpu_custom_call.1} parent=31 // pred_check
          %p691 = pneg %p122
        $region38: #{tpu_custom_call.1} parent=31 // pred_check_branch
          %693 = sbr.rel (%p691) target = $region40
        $region39: #{tpu_custom_call.1} parent=31 // pred_region
          %695 = vsyncadd %s687, 0
          %s696 = smul.addr %s24, 8
          %s697 = sadd.s32 %s25, %s696
          %s698 = smul.addr %s697, 8
          %s699 = scalar_lea.hbm %s3, %s698
          %s700 = sshll.u32 %s690, 4
          %s701 = int_to_ptr.vmem [resolvable:$true] %s700
          %s702 = sshll.u32 %s699, 4
          %s703 = int_to_ptr.hbm [resolvable:$true] %s702
          %708 = dma.vmem_to_hbm [thread:$0]  %s701, 1024, %s703, %s687, 128, 128, 8
        $region40: #{tpu_custom_call.1} parent=31 // pred_fallthru
          _
      $region32: #{tpu_custom_call.1} parent=5 // pred_fallthru
        _
      %p709 = scmp.le.s32.totalorder 2, %s15
      // Predicated region
      $region41: #{tpu_custom_call.1} parent=5 // pred_check
        %p710 = pneg %p709
      $region42: #{tpu_custom_call.1} parent=5 // pred_check_branch
        %712 = sbr.rel (%p710) target = $region44
      $region43: #{tpu_custom_call.1} parent=5 // pred_region
        %s713 = ssub.s32 %s15, 2
        // Predicated region
        $region45: #{tpu_custom_call.1} parent=43 // pred_check
          %p714 = pneg %p128
        $region46: #{tpu_custom_call.1} parent=43 // pred_check_branch
          %716 = sbr.rel (%p714) target = $region48
        $region47: #{tpu_custom_call.1} parent=43 // pred_region
          %s717 = sand.u32 %s113, 1
          %s718 = scalar_lea.sflag [#allocation4], %s717
          %s719 = sand.u32 %s113, 1
          %s720 = smul.addr %s719, 64
          %s721 = scalar_lea.vmem [#allocation5], %s720
          %723 = dma.done %s718, 1024
        $region48: #{tpu_custom_call.1} parent=43 // pred_fallthru
          _
      $region44: #{tpu_custom_call.1} parent=5 // pred_fallthru
        _
    $region6: #{tpu_custom_call.1} parent=1 // loop_footer
      %s19 = sadd.s32 1, %s15
    $region7: #{tpu_custom_call.1} parent=1 // loop_footer_branch
      %14 = sbr.rel target = $region3
    $region8: #{tpu_custom_call.1} parent=1 // loop_exit
      _
    %724 = vsyncpa [#allocation3], 1
    %s725 = scalar_lea.sflag [#allocation3], 1
    %726 = vsyncpa %s725, 1
    %727 = vsyncpa [#allocation4], 1
    %s728 = scalar_lea.sflag [#allocation4], 1
    %729 = vsyncpa %s728, 1

</llo_original>
